<compile_context>
chip_gen: v7x
topology: tpu7x:2x2x1
jax: 0.10.0
libtpu: 0.0.40
codegen_flags: <defaults>
</compile_context>

<pallas_src>
import functools

import jax
import jax.numpy as jnp
from jax.experimental import pallas as pl
from jax.experimental.pallas import tpu as pltpu

LANE = 128  # pad the tiny class dimension to a full lane width (unmasked vst)


# ---------------------------------------------------------------------------
# Kernels
# ---------------------------------------------------------------------------
def gcn2_fused_kernel(a_ref, x_ref, w1_ref, b1_ref, w2_ref, b2_ref, o_ref):
    """Fused 2-layer GCN forward; all operands whole-array resident in VMEM.

    a/x/w1/w2 : bf16 (MXU-native)   b1/b2/out : f32
    """
    a = a_ref[...]                                        # (N, N)   bf16
    x = x_ref[...]                                        # (N, Fin) bf16

    # ---- layer 1: A_hat @ (X W1) + b1, ReLU ----
    xw1 = jnp.dot(x, w1_ref[...],
                  preferred_element_type=jnp.float32)     # (N, Fhid) f32 acc
    h = jnp.dot(a, xw1.astype(jnp.bfloat16),
                preferred_element_type=jnp.float32) + b1_ref[...]
    # elementwise in f32 then one cast (v5e VPU has no bf16 ALUs)
    h = jnp.maximum(h, 0.0).astype(jnp.bfloat16)

    # ---- layer 2: A_hat @ (H W2) + b2  (W2/b2 zero-padded to 128 lanes) ----
    hw2 = jnp.dot(h, w2_ref[...],
                  preferred_element_type=jnp.float32)     # (N, 128) f32 acc
    o_ref[...] = jnp.dot(a, hw2.astype(jnp.bfloat16),
                         preferred_element_type=jnp.float32) + b2_ref[...]


def gcn_layer_kernel(a_ref, x_ref, w_ref, b_ref, o_ref, *, apply_relu):
    """One GCN layer over a row tile of A_hat:  o_tile = A_tile @ (X W) + b.

    X@W is recomputed per row tile (tiny vs. the A_tile matmul at large N).
    TODO(synk): precompute X@W once per layer at large N and feed it directly.
    """
    xw = jnp.dot(x_ref[...], w_ref[...],
                 preferred_element_type=jnp.float32)      # (N, Fout) f32 acc
    out = jnp.dot(a_ref[...], xw.astype(jnp.bfloat16),
                  preferred_element_type=jnp.float32) + b_ref[...]
    if apply_relu:
        out = jnp.maximum(out, 0.0)
    o_ref[...] = out.astype(o_ref.dtype)


# ---------------------------------------------------------------------------
# Wrappers
# ---------------------------------------------------------------------------
def _vmem_limit(bytes_needed):
    """Scoped-VMEM limit: generous over the real need, >= platform defaults."""
    return int(min(max(2 * bytes_needed + (2 << 20), 32 << 20), 100 << 20))


def prepare_params(a_hat, x, w1, b1, w2, b2):
    """One-time prep (outside the hot path): bf16 casts + lane padding."""
    out_dim = w2.shape[1]
    pad = LANE - out_dim
    return {
        "a": a_hat.astype(jnp.bfloat16),
        "x": x.astype(jnp.bfloat16),
        "w1": w1.astype(jnp.bfloat16),
        "b1": b1.astype(jnp.float32).reshape(1, -1),
        "w2": jnp.pad(w2, ((0, 0), (0, pad))).astype(jnp.bfloat16),
        "b2": jnp.pad(b2.reshape(1, -1), ((0, 0), (0, pad))).astype(jnp.float32),
    }


def _fused_vmem_bytes(n, f_in, f_hid):
    ins = (2 * n * n + 2 * n * f_in + 2 * f_in * f_hid + 4 * f_hid
           + 2 * f_hid * LANE + 4 * LANE)
    out = 4 * n * LANE
    scratch = 4 * n * f_hid + 2 * n * f_hid + 4 * n * LANE + 2 * n * LANE
    return ins + out + scratch


@jax.jit
def social_gnn_forward_fused(a_bf, x_bf, w1_bf, b1_f32, w2_bf, b2_pad):
    """Fused single-block forward. Returns lane-dense padded (N, 128) f32 logits."""
    n, f_in = x_bf.shape
    f_hid = w1_bf.shape[1]

    flops = 2 * (n * f_in * f_hid + n * n * f_hid
                 + n * f_hid * LANE + n * n * LANE)
    bytes_accessed = (2 * (n * n + n * f_in + f_in * f_hid + f_hid * LANE)
                      + 4 * (f_hid + LANE) + 4 * n * LANE)

    vmem = pl.BlockSpec(memory_space=pltpu.MemorySpace.VMEM)
    return pl.pallas_call(
        gcn2_fused_kernel,
        out_shape=jax.ShapeDtypeStruct((n, LANE), jnp.float32),
        in_specs=[vmem] * 6,
        out_specs=vmem,
        cost_estimate=pl.CostEstimate(flops=flops, transcendentals=0,
                                      bytes_accessed=bytes_accessed),
        compiler_params=pltpu.CompilerParams(
            vmem_limit_bytes=_vmem_limit(_fused_vmem_bytes(n, f_in, f_hid))),
    )(a_bf, x_bf, w1_bf, b1_f32, w2_bf, b2_pad)


def _gcn_layer_tiled(a_bf, x_bf, w_bf, b_f32, *, tile_m, out_dtype, apply_relu):
    """Row-tiled single GCN layer: grid over row tiles of A_hat (parallel)."""
    n = a_bf.shape[0]
    k = x_bf.shape[1]
    f_out = w_bf.shape[1]
    grid_m = pl.cdiv(n, tile_m)
    out_isz = jnp.dtype(out_dtype).itemsize

    flops = 2 * (grid_m * n * k * f_out + n * n * f_out)
    bytes_accessed = (2 * n * n                              # A tiles (once total)
                      + grid_m * 2 * (n * k + k * f_out)     # X, W per tile
                      + grid_m * 4 * f_out
                      + n * f_out * out_isz)
    need = (2 * tile_m * n * 2                               # A tile double-buffer
            + 2 * n * k + 2 * k * f_out + 4 * f_out
            + 2 * tile_m * f_out * out_isz
            + 4 * n * f_out + 4 * tile_m * f_out)            # xw / intermediates

    return pl.pallas_call(
        functools.partial(gcn_layer_kernel, apply_relu=apply_relu),
        out_shape=jax.ShapeDtypeStruct((n, f_out), out_dtype),
        grid=(grid_m,),
        in_specs=[
            pl.BlockSpec((tile_m, n), lambda i: (i, 0)),     # A_hat row tile
            pl.BlockSpec((n, k), lambda i: (0, 0)),          # X / H (full)
            pl.BlockSpec((k, f_out), lambda i: (0, 0)),      # W (full)
            pl.BlockSpec((1, f_out), lambda i: (0, 0)),      # bias
        ],
        out_specs=pl.BlockSpec((tile_m, f_out), lambda i: (i, 0)),
        cost_estimate=pl.CostEstimate(flops=flops, transcendentals=0,
                                      bytes_accessed=bytes_accessed),
        compiler_params=pltpu.CompilerParams(
            dimension_semantics=("parallel",),               # megacore on v7x
            vmem_limit_bytes=_vmem_limit(need)),
    )(a_bf, x_bf, w_bf, b_f32)


@functools.partial(jax.jit, static_argnames=("tile_m",))
def social_gnn_forward_tiled(a_bf, x_bf, w1_bf, b1_f32, w2_bf, b2_pad, *,
                             tile_m=256):
    """Row-tiled, per-layer forward for large N (and v7x megacore)."""
    n = a_bf.shape[0]
    tile_m = max(8, min(tile_m, n))
    h = _gcn_layer_tiled(a_bf, x_bf, w1_bf, b1_f32, tile_m=tile_m,
                         out_dtype=jnp.bfloat16, apply_relu=True)
    return _gcn_layer_tiled(a_bf, h, w2_bf, b2_pad, tile_m=tile_m,
                            out_dtype=jnp.float32, apply_relu=False)


# ---------------------------------------------------------------------------
# Graph prep + references (outside the hot path)
# ---------------------------------------------------------------------------
def gcn_norm_dense(edge_index, num_nodes):
    """Dense D^{-1/2}(A+I)D^{-1/2}, message flow source->target, matching
    torch_geometric GCNConv's gcn_norm (add_self_loops=True).  Built once."""
    src = edge_index[0]
    dst = edge_index[1]
    loops = jnp.arange(num_nodes, dtype=src.dtype)
    src = jnp.concatenate([src, loops])
    dst = jnp.concatenate([dst, loops])
    deg = jnp.zeros((num_nodes,), jnp.float32).at[dst].add(1.0)
    dinv = jnp.where(deg > 0, 1.0 / jnp.sqrt(deg), 0.0)
    norm = dinv[src] * dinv[dst]
    a_hat = jnp.zeros((num_nodes, num_nodes), jnp.float32).at[dst, src].add(norm)
    return a_hat


def glorot(key, shape):
    fan_in, fan_out = shape
    limit = jnp.sqrt(6.0 / (fan_in + fan_out))
    return jax.random.uniform(key, shape, jnp.float32, -limit, limit)


def reference_forward_f32(a_hat, x, w1, b1, w2, b2):
    h = jnp.maximum(a_hat @ (x @ w1) + b1, 0.0)
    return a_hat @ (h @ w2) + b2


def reference_forward_bf16(a_hat, x, w1, b1, w2, b2):
    bf, f32 = jnp.bfloat16, jnp.float32
    xw1 = jnp.dot(x.astype(bf), w1.astype(bf), preferred_element_type=f32)
    h = jnp.dot(a_hat.astype(bf), xw1.astype(bf), preferred_element_type=f32) + b1
    h = jnp.maximum(h, 0.0).astype(bf)
    hw2 = jnp.dot(h, w2.astype(bf), preferred_element_type=f32)
    return jnp.dot(a_hat.astype(bf), hw2.astype(bf), preferred_element_type=f32) + b2


if __name__ == "__main__":
    # Small synthetic graph: N nodes, undirected ring (matches the module's
    # data.x / data.edge_index interface at toy scale).
    N = 128                 # number of nodes
    NUM_OF_FEAT = 16        # data.num_node_features
    F_HID = 32              # hidden width "f"
    NUM_CLASSES = 2         # conv2 output

    key = jax.random.PRNGKey(0)
    kx, kw1, kw2 = jax.random.split(key, 3)

    x = jax.random.normal(kx, (N, NUM_OF_FEAT), jnp.float32)
    idx = jnp.arange(N, dtype=jnp.int32)
    src = jnp.concatenate([idx, (idx + 1) % N])
    dst = jnp.concatenate([(idx + 1) % N, idx])
    edge_index = jnp.stack([src, dst], axis=0)            # (2, 2N)

    # GCNConv parameters (glorot weights, zero biases, matching PyG defaults).
    w1 = glorot(kw1, (NUM_OF_FEAT, F_HID))
    b1 = jnp.zeros((F_HID,), jnp.float32)
    w2 = glorot(kw2, (F_HID, NUM_CLASSES))
    b2 = jnp.zeros((NUM_CLASSES,), jnp.float32)

    # --- one-time prep: A_hat build + all bf16 casts / lane padding ---------
    a_hat = gcn_norm_dense(edge_index, N)
    params = prepare_params(a_hat, x, w1, b1, w2, b2)
    for v in params.values():
        v.block_until_ready()

    # --- fused single-block path (hot path = one pallas_call) ---------------
    out_pad = social_gnn_forward_fused(
        params["a"], params["x"], params["w1"], params["b1"],
        params["w2"], params["b2"])
    out_pad = jax.block_until_ready(out_pad)
    assert out_pad.shape == (N, LANE)
    out = out_pad[:, :NUM_CLASSES]   # slice only here, in the test harness

    # --- row-tiled, per-layer path (parallel grid; v7x/megacore ready) ------
    out_tiled_pad = social_gnn_forward_tiled(
        params["a"], params["x"], params["w1"], params["b1"],
        params["w2"], params["b2"], tile_m=64)
    out_tiled_pad = jax.block_until_ready(out_tiled_pad)
    assert out_tiled_pad.shape == (N, LANE)
    assert jnp.allclose(out_pad, out_tiled_pad, atol=1e-4, rtol=1e-4)

    # Tight check against a precision-matched (bf16-operand, f32-accum) ref.
    ref_bf16 = reference_forward_bf16(a_hat, x, w1, b1, w2, b2)
    assert jnp.allclose(out, ref_bf16, atol=1e-3, rtol=1e-3)

    # Loose check against the full-f32 reference (bf16 inputs -> ~1e-2 rel).
    ref_f32 = reference_forward_f32(a_hat, x, w1, b1, w2, b2)
    assert jnp.allclose(out, ref_f32, atol=5e-2, rtol=5e-2)

    print("KERNEL_OK")
</pallas_src>

<mosaic_0001>
module attributes {stable_mosaic.version = 11 : i64} {
  func.func @gcn2_fused_kernel(%arg0: memref<128x128xbf16, #tpu.memory_space<vmem>>, %arg1: memref<128x16xbf16, #tpu.memory_space<vmem>>, %arg2: memref<16x32xbf16, #tpu.memory_space<vmem>>, %arg3: memref<1x32xf32, #tpu.memory_space<vmem>>, %arg4: memref<32x128xbf16, #tpu.memory_space<vmem>>, %arg5: memref<1x128xf32, #tpu.memory_space<vmem>>, %arg6: memref<128x128xf32, #tpu.memory_space<vmem>>) attributes {dimension_semantics = [], scalar_prefetch = 0 : i64, scratch_operands = 0 : i64, tpu.core_type = #tpu.core_type<tc>} {
    %c0 = arith.constant 0 : index
    %c0_0 = arith.constant 0 : index
    %0 = vector.load %arg0[%c0, %c0_0] : memref<128x128xbf16, #tpu.memory_space<vmem>>, vector<128x128xbf16>
    %c0_1 = arith.constant 0 : index
    %c0_2 = arith.constant 0 : index
    %1 = vector.load %arg1[%c0_1, %c0_2] : memref<128x16xbf16, #tpu.memory_space<vmem>>, vector<128x16xbf16>
    %c0_3 = arith.constant 0 : index
    %c0_4 = arith.constant 0 : index
    %2 = vector.load %arg2[%c0_3, %c0_4] : memref<16x32xbf16, #tpu.memory_space<vmem>>, vector<16x32xbf16>
    %cst = arith.constant dense<0.000000e+00> : vector<128x32xf32>
    %3 = tpu.matmul %1, %2, %cst {dimension_numbers = #tpu.dot_dimension_numbers<[1], [0], [0], [1], [0, 0, 1, 1], [], []>} : vector<128x16xbf16>, vector<16x32xbf16>, vector<128x32xf32> -> vector<128x32xf32>
    %4 = arith.truncf %3 : vector<128x32xf32> to vector<128x32xbf16>
    %cst_5 = arith.constant dense<0.000000e+00> : vector<128x32xf32>
    %5 = tpu.matmul %0, %4, %cst_5 {dimension_numbers = #tpu.dot_dimension_numbers<[1], [0], [0], [1], [0, 0, 1, 1], [], []>} : vector<128x128xbf16>, vector<128x32xbf16>, vector<128x32xf32> -> vector<128x32xf32>
    %c0_6 = arith.constant 0 : index
    %c0_7 = arith.constant 0 : index
    %6 = vector.load %arg3[%c0_6, %c0_7] : memref<1x32xf32, #tpu.memory_space<vmem>>, vector<1x32xf32>
    %7 = vector.broadcast %6 : vector<1x32xf32> to vector<128x32xf32>
    %8 = arith.addf %5, %7 : vector<128x32xf32>
    %cst_8 = arith.constant 0.000000e+00 : f32
    %9 = vector.broadcast %cst_8 : f32 to vector<128x32xf32>
    %10 = arith.maximumf %8, %9 : vector<128x32xf32>
    %11 = arith.truncf %10 : vector<128x32xf32> to vector<128x32xbf16>
    %c0_9 = arith.constant 0 : index
    %c0_10 = arith.constant 0 : index
    %12 = vector.load %arg4[%c0_9, %c0_10] : memref<32x128xbf16, #tpu.memory_space<vmem>>, vector<32x128xbf16>
    %cst_11 = arith.constant dense<0.000000e+00> : vector<128x128xf32>
    %13 = tpu.matmul %11, %12, %cst_11 {dimension_numbers = #tpu.dot_dimension_numbers<[1], [0], [0], [1], [0, 0, 1, 1], [], []>} : vector<128x32xbf16>, vector<32x128xbf16>, vector<128x128xf32> -> vector<128x128xf32>
    %14 = arith.truncf %13 : vector<128x128xf32> to vector<128x128xbf16>
    %cst_12 = arith.constant dense<0.000000e+00> : vector<128x128xf32>
    %15 = tpu.matmul %0, %14, %cst_12 {dimension_numbers = #tpu.dot_dimension_numbers<[1], [0], [0], [1], [0, 0, 1, 1], [], []>} : vector<128x128xbf16>, vector<128x128xbf16>, vector<128x128xf32> -> vector<128x128xf32>
    %c0_13 = arith.constant 0 : index
    %c0_14 = arith.constant 0 : index
    %16 = vector.load %arg5[%c0_13, %c0_14] : memref<1x128xf32, #tpu.memory_space<vmem>>, vector<1x128xf32>
    %17 = vector.broadcast %16 : vector<1x128xf32> to vector<128x128xf32>
    %18 = arith.addf %15, %17 : vector<128x128xf32>
    %c0_15 = arith.constant 0 : index
    %c0_16 = arith.constant 0 : index
    %19 = vector.load %arg6[%c0_15, %c0_16] : memref<128x128xf32, #tpu.memory_space<vmem>>, vector<128x128xf32>
    tpu.vector_store %arg6[%c0_15, %c0_16], %18 {strides = array<i32>} : memref<128x128xf32, #tpu.memory_space<vmem>>, vector<128x128xf32>,
    return
  }
}

</mosaic_0001>

<llo_original>
// kernel: social_gnn_forward_fused.1
$region0: #{social_gnn_forward_fused.1}
  #allocation0 [shape = 'u32[]', space=smem, size = 0x4, offset = 0x4, fixed_abs, tag = 'smem constant byte address 0x4 - core index']
  #allocation1 [shape = 'u32[144,128]{1,0:T(1,128)}', space=vmem, size = 0x12000, scoped, tag = 'internal scratch']
  %s0 = inlined_call_operand.vmem [shape: bf16[128,128], index: 0, kind: input, shape index: {}]
  %s1 = inlined_call_operand.vmem [shape: bf16[128,16], index: 1, kind: input, shape index: {}]
  %s2 = inlined_call_operand.hbm [shape: bf16[16,32], index: 2, kind: input, shape index: {}]
  %s3 = inlined_call_operand.vmem [shape: f32[1,32], index: 3, kind: input, shape index: {}]
  %s4 = inlined_call_operand.vmem [shape: bf16[32,128], index: 4, kind: input, shape index: {}]
  %s5 = inlined_call_operand.vmem [shape: f32[1,128], index: 5, kind: input, shape index: {}]
  %s6 = inlined_call_operand.hbm [shape: f32[128,128], index: 6, kind: output, shape index: {}]
  %s7 = sld [smem:[#allocation0]]
  $region38: #{social_gnn_forward_fused.1} parent=0
    _
  %s9 = ssub.s32 1, %s7
  %s10 = scalar_select 0, %s9, %s7
  $region1: #{social_gnn_forward_fused.1} parent=0
    #allocation2 [shape = 'u8[4096]{0}', space=vmem, size = 0x1000, scoped, tag = 'input window, operand 2, single buffered']
    #allocation3 [shape = 's32[1]{0}', space=sflag, size = 0x4, scoped, tag = 'scoped memory for social_gnn_forward_fused.1']
    #allocation4 [shape = 's32[1]{0}', space=sflag, size = 0x4, scoped, tag = 'scoped memory for social_gnn_forward_fused.1']
    #allocation5 [shape = 'u8[65536]{0}', space=vmem, size = 0x10000, scoped, tag = 'output window, operand 0, single buffered']
    %11 = vsyncpa [#allocation3], 0
    %12 = vsyncpa [#allocation4], 0
    // Predicated region
    $region2: #{social_gnn_forward_fused.1} parent=1 // pred_check
      _
    $region3: #{social_gnn_forward_fused.1} parent=1 // pred_check_branch
      %14 = sbr.rel (0) target = $region5
    $region4: #{social_gnn_forward_fused.1} parent=1 // pred_region
      _
    $region5: #{social_gnn_forward_fused.1} parent=1 // pred_fallthru
      _
    // Predicated region
    $region6: #{social_gnn_forward_fused.1} parent=1 // pred_check
      _
    $region7: #{social_gnn_forward_fused.1} parent=1 // pred_check_branch
      %16 = sbr.rel (0) target = $region9
    $region8: #{social_gnn_forward_fused.1} parent=1 // pred_region
      _
    $region9: #{social_gnn_forward_fused.1} parent=1 // pred_fallthru
      _
    // Predicated region
    $region10: #{social_gnn_forward_fused.1} parent=1 // pred_check
      _
    $region11: #{social_gnn_forward_fused.1} parent=1 // pred_check_branch
      %18 = sbr.rel (0) target = $region13
    $region12: #{social_gnn_forward_fused.1} parent=1 // pred_region
      %s20 = ssub.s32 128, 128
      %21 = vsyncadd [#allocation3], %s20
      %s22 = sshll.u32 [#allocation2], 4
      %s23 = int_to_ptr.vmem [resolvable:$true] %s22
      %28 = dma.hbm_to_vmem [thread:$0]  %s2, 128, %s23, [#allocation3], 64, 64, 4
    $region13: #{social_gnn_forward_fused.1} parent=1 // pred_fallthru
      _
    // Predicated region
    $region14: #{social_gnn_forward_fused.1} parent=1 // pred_check
      _
    $region15: #{social_gnn_forward_fused.1} parent=1 // pred_check_branch
      %30 = sbr.rel (0) target = $region17
    $region16: #{social_gnn_forward_fused.1} parent=1 // pred_region
      _
    $region17: #{social_gnn_forward_fused.1} parent=1 // pred_fallthru
      _
    // Predicated region
    $region18: #{social_gnn_forward_fused.1} parent=1 // pred_check
      _
    $region19: #{social_gnn_forward_fused.1} parent=1 // pred_check_branch
      %32 = sbr.rel (0) target = $region21
    $region20: #{social_gnn_forward_fused.1} parent=1 // pred_region
      _
    $region21: #{social_gnn_forward_fused.1} parent=1 // pred_fallthru
      _
    // Predicated region
    $region22: #{social_gnn_forward_fused.1} parent=1 // pred_check
      _
    $region23: #{social_gnn_forward_fused.1} parent=1 // pred_check_branch
      %34 = sbr.rel (0) target = $region25
    $region24: #{social_gnn_forward_fused.1} parent=1 // pred_region
      _
    $region25: #{social_gnn_forward_fused.1} parent=1 // pred_fallthru
      _
    // Predicated region
    $region26: #{social_gnn_forward_fused.1} parent=1 // pred_check
      _
    $region27: #{social_gnn_forward_fused.1} parent=1 // pred_check_branch
      %36 = sbr.rel (0) target = $region29
    $region28: #{social_gnn_forward_fused.1} parent=1 // pred_region
      %37 = dma.done [#allocation3], 128
    $region29: #{social_gnn_forward_fused.1} parent=1 // pred_fallthru
      _
    %v39 = vld [vmem:[%s0] sm:$0xf]
    %v40 = vld [vmem:[%s0 + $0x4] sm:$0xf]
    %v41 = vld [vmem:[%s0 + $0x8] sm:$0xf]
    %v42 = vld [vmem:[%s0 + $0xc] sm:$0xf]
    %v43 = vld [vmem:[%s0 + $0x10] sm:$0xf]
    %v44 = vld [vmem:[%s0 + $0x14] sm:$0xf]
    %v45 = vld [vmem:[%s0 + $0x18] sm:$0xf]
    %v46 = vld [vmem:[%s0 + $0x1c] sm:$0xf]
    %v47 = vld [vmem:[%s0 + $0x20] sm:$0xf]
    %v48 = vld [vmem:[%s0 + $0x24] sm:$0xf]
    %v49 = vld [vmem:[%s0 + $0x28] sm:$0xf]
    %v50 = vld [vmem:[%s0 + $0x2c] sm:$0xf]
    %v51 = vld [vmem:[%s0 + $0x30] sm:$0xf]
    %v52 = vld [vmem:[%s0 + $0x34] sm:$0xf]
    %v53 = vld [vmem:[%s0 + $0x38] sm:$0xf]
    %v54 = vld [vmem:[%s0 + $0x3c] sm:$0xf]
    %v55 = vld [vmem:[%s1] sm:$0xf]
    %v56 = vld [vmem:[%s1 + $0x4] sm:$0xf]
    %v57 = vld [vmem:[%s1 + $0x8] sm:$0xf]
    %v58 = vld [vmem:[%s1 + $0xc] sm:$0xf]
    %v59 = vld [vmem:[%s1 + $0x10] sm:$0xf]
    %v60 = vld [vmem:[%s1 + $0x14] sm:$0xf]
    %v61 = vld [vmem:[%s1 + $0x18] sm:$0xf]
    %v62 = vld [vmem:[%s1 + $0x1c] sm:$0xf]
    %v63 = vld [vmem:[%s1 + $0x20] sm:$0xf]
    %v64 = vld [vmem:[%s1 + $0x24] sm:$0xf]
    %v65 = vld [vmem:[%s1 + $0x28] sm:$0xf]
    %v66 = vld [vmem:[%s1 + $0x2c] sm:$0xf]
    %v67 = vld [vmem:[%s1 + $0x30] sm:$0xf]
    %v68 = vld [vmem:[%s1 + $0x34] sm:$0xf]
    %v69 = vld [vmem:[%s1 + $0x38] sm:$0xf]
    %v70 = vld [vmem:[%s1 + $0x3c] sm:$0xf]
    %v71 = vld [vmem:[#allocation2] sm:$0xf]
    %v72 = vld [vmem:[#allocation2 + $0x4] sm:$0xf]
    %v89 = vunpack.c.l.b16 %v55
    %v90 = vunpack.c.l.b16 %v56
    %v91 = vunpack.c.l.b16 %v57
    %v92 = vunpack.c.l.b16 %v58
    %v93 = vunpack.c.l.b16 %v59
    %v94 = vunpack.c.l.b16 %v60
    %v95 = vunpack.c.l.b16 %v61
    %v96 = vunpack.c.l.b16 %v62
    %v97 = vunpack.c.l.b16 %v63
    %v98 = vunpack.c.l.b16 %v64
    %v99 = vunpack.c.l.b16 %v65
    %v100 = vunpack.c.l.b16 %v66
    %v101 = vunpack.c.l.b16 %v67
    %v102 = vunpack.c.l.b16 %v68
    %v103 = vunpack.c.l.b16 %v69
    %v104 = vunpack.c.l.b16 %v70
    %v105 = vpack.c.b16 %v90, %v89
    %v106 = vpack.c.b16 %v92, %v91
    %v107 = vpack.c.b16 %v94, %v93
    %v108 = vpack.c.b16 %v96, %v95
    %v109 = vpack.c.b16 %v98, %v97
    %v110 = vpack.c.b16 %v100, %v99
    %v111 = vpack.c.b16 %v102, %v101
    %v112 = vpack.c.b16 %v104, %v103
    %v115 = vunpack.c.l.b16 %v71
    %v116 = vunpack.c.l.b16 %v72
    %v117 = vpack.c.b16 %v116, %v115
    %vm119 = vcmask 130048
    %v121 = vsel %vm119, %v105, 0
    %v124 = vsel %vm119, %v106, 0
    %v127 = vsel %vm119, %v107, 0
    %v130 = vsel %vm119, %v108, 0
    %v133 = vsel %vm119, %v109, 0
    %v136 = vsel %vm119, %v110, 0
    %v139 = vsel %vm119, %v111, 0
    %v142 = vsel %vm119, %v112, 0
    %144 = vmatprep.subr.bf16.mxu0 0
    %145 = vmatpush1.bf16.msra.mxu0 %v117
    %146 = vmatprep.subr.bf16.mxu0 0
    %147 = vmatpush1.bf16.msra.mxu0 0
    %148 = vmatprep.subr.bf16.mxu0 0
    %149 = vmatpush1.bf16.msra.mxu0 0
    %150 = vmatprep.subr.bf16.mxu0 0
    %151 = vmatpush1.bf16.msra.mxu0 0
    %152 = vmatprep.subr.bf16.mxu0 0
    %153 = vmatpush1.bf16.msra.mxu0 0
    %154 = vmatprep.subr.bf16.mxu0 0
    %155 = vmatpush1.bf16.msra.mxu0 0
    %156 = vmatprep.subr.bf16.mxu0 0
    %157 = vmatpush1.bf16.msra.mxu0 0
    %158 = vmatprep.subr.bf16.mxu0 0
    %159 = vmatpush1.bf16.msra.mxu0 0
    %160 = vmatprep.subr.bf16.mxu0 0
    %161 = vmatpush1.bf16.msra.mxu0 0
    %162 = vmatprep.subr.bf16.mxu0 0
    %163 = vmatpush1.bf16.msra.mxu0 0
    %164 = vmatprep.subr.bf16.mxu0 0
    %165 = vmatpush1.bf16.msra.mxu0 0
    %166 = vmatprep.subr.bf16.mxu0 0
    %167 = vmatpush1.bf16.msra.mxu0 0
    %168 = vmatprep.subr.bf16.mxu0 0
    %169 = vmatpush1.bf16.msra.mxu0 0
    %170 = vmatprep.subr.bf16.mxu0 0
    %171 = vmatpush1.bf16.msra.mxu0 0
    %172 = vmatprep.subr.bf16.mxu0 0
    %173 = vmatpush1.bf16.msra.mxu0 0
    %174 = vmatprep.subr.bf16.mxu0 0
    %175 = vmatpush1.bf16.msra.mxu0 0
    %176 = vmatprep.mubr.bf16.mxu0 0
    %177 = vmatmul.mubr.bf16.gmra.mrb[0].mxu0 %v121
    %v178 = vpop.f32.mrb[0].mxu0
    %v179 = vadd.f32 0.0, %v178
    %v180 = vpop.f32.mrb[0].mxu0
    %v181 = vpop.f32.mrb[0].mxu0
    %v182 = vadd.f32 0.0, %v181
    %v183 = vpop.f32.mrb[0].mxu0
    %184 = vmatprep.mubr.bf16.mxu0 0
    %185 = vmatmul.mubr.bf16.gmra.mrb[0].mxu0 %v124
    %v186 = vpop.f32.mrb[0].mxu0
    %v187 = vadd.f32 0.0, %v186
    %v188 = vpop.f32.mrb[0].mxu0
    %v189 = vpop.f32.mrb[0].mxu0
    %v190 = vadd.f32 0.0, %v189
    %v191 = vpop.f32.mrb[0].mxu0
    %192 = vmatprep.mubr.bf16.mxu0 0
    %193 = vmatmul.mubr.bf16.gmra.mrb[0].mxu0 %v127
    %v194 = vpop.f32.mrb[0].mxu0
    %v195 = vadd.f32 0.0, %v194
    %v196 = vpop.f32.mrb[0].mxu0
    %v197 = vpop.f32.mrb[0].mxu0
    %v198 = vadd.f32 0.0, %v197
    %v199 = vpop.f32.mrb[0].mxu0
    %200 = vmatprep.mubr.bf16.mxu0 0
    %201 = vmatmul.mubr.bf16.gmra.mrb[0].mxu0 %v130
    %v202 = vpop.f32.mrb[0].mxu0
    %v203 = vadd.f32 0.0, %v202
    %v204 = vpop.f32.mrb[0].mxu0
    %v205 = vpop.f32.mrb[0].mxu0
    %v206 = vadd.f32 0.0, %v205
    %v207 = vpop.f32.mrb[0].mxu0
    %208 = vmatprep.mubr.bf16.mxu0 0
    %209 = vmatmul.mubr.bf16.gmra.mrb[0].mxu0 %v133
    %v210 = vpop.f32.mrb[0].mxu0
    %v211 = vadd.f32 0.0, %v210
    %v212 = vpop.f32.mrb[0].mxu0
    %v213 = vpop.f32.mrb[0].mxu0
    %v214 = vadd.f32 0.0, %v213
    %v215 = vpop.f32.mrb[0].mxu0
    %216 = vmatprep.mubr.bf16.mxu0 0
    %217 = vmatmul.mubr.bf16.gmra.mrb[0].mxu0 %v136
    %v218 = vpop.f32.mrb[0].mxu0
    %v219 = vadd.f32 0.0, %v218
    %v220 = vpop.f32.mrb[0].mxu0
    %v221 = vpop.f32.mrb[0].mxu0
    %v222 = vadd.f32 0.0, %v221
    %v223 = vpop.f32.mrb[0].mxu0
    %224 = vmatprep.mubr.bf16.mxu0 0
    %225 = vmatmul.mubr.bf16.gmra.mrb[0].mxu0 %v139
    %v226 = vpop.f32.mrb[0].mxu0
    %v227 = vadd.f32 0.0, %v226
    %v228 = vpop.f32.mrb[0].mxu0
    %v229 = vpop.f32.mrb[0].mxu0
    %v230 = vadd.f32 0.0, %v229
    %v231 = vpop.f32.mrb[0].mxu0
    %232 = vmatprep.mubr.bf16.mxu0 0
    %233 = vmatmul.mubr.bf16.gmra.mrb[0].mxu0 %v142
    %v234 = vpop.f32.mrb[0].mxu0
    %v235 = vadd.f32 0.0, %v234
    %v236 = vpop.f32.mrb[0].mxu0
    %v237 = vpop.f32.mrb[0].mxu0
    %v238 = vadd.f32 0.0, %v237
    %v239 = vpop.f32.mrb[0].mxu0
    %240 = vdwg.mxu0
    %v241 = vpack.c.bf16 %v182, %v179
    %v242 = vpack.c.bf16 %v190, %v187
    %v243 = vpack.c.bf16 %v198, %v195
    %v244 = vpack.c.bf16 %v206, %v203
    %v245 = vpack.c.bf16 %v214, %v211
    %v246 = vpack.c.bf16 %v222, %v219
    %v247 = vpack.c.bf16 %v230, %v227
    %v248 = vpack.c.bf16 %v238, %v235
    %v249 = vld [vmem:[%s3] sm:$0x1]
    %v251 = vlaneseq
    %v252 = vshrl.u32 %v251, 7
    %v253 = vsub.s32 0, %v252
    %v254 = vrot.slane %v249, %v253
    %v272 = vunpack.c.l.b16 %v39
    %v273 = vunpack.c.l.b16 %v40
    %v274 = vunpack.c.l.b16 %v41
    %v275 = vunpack.c.l.b16 %v42
    %v276 = vunpack.c.l.b16 %v43
    %v277 = vunpack.c.l.b16 %v44
    %v278 = vunpack.c.l.b16 %v45
    %v279 = vunpack.c.l.b16 %v46
    %v280 = vunpack.c.l.b16 %v47
    %v281 = vunpack.c.l.b16 %v48
    %v282 = vunpack.c.l.b16 %v49
    %v283 = vunpack.c.l.b16 %v50
    %v284 = vunpack.c.l.b16 %v51
    %v285 = vunpack.c.l.b16 %v52
    %v286 = vunpack.c.l.b16 %v53
    %v287 = vunpack.c.l.b16 %v54
    %v288 = vpack.c.b16 %v273, %v272
    %v289 = vpack.c.b16 %v275, %v274
    %v290 = vpack.c.b16 %v277, %v276
    %v291 = vpack.c.b16 %v279, %v278
    %v292 = vpack.c.b16 %v281, %v280
    %v293 = vpack.c.b16 %v283, %v282
    %v294 = vpack.c.b16 %v285, %v284
    %v295 = vpack.c.b16 %v287, %v286
    %304 = vmatprep.subr.bf16.mxu0 0
    %305 = vmatpush1.bf16.msra.mxu0 %v241
    %306 = vmatprep.subr.bf16.mxu0 0
    %307 = vmatpush1.bf16.msra.mxu0 %v242
    %308 = vmatprep.subr.bf16.mxu0 0
    %309 = vmatpush1.bf16.msra.mxu0 %v243
    %310 = vmatprep.subr.bf16.mxu0 0
    %311 = vmatpush1.bf16.msra.mxu0 %v244
    %312 = vmatprep.subr.bf16.mxu0 0
    %313 = vmatpush1.bf16.msra.mxu0 %v245
    %314 = vmatprep.subr.bf16.mxu0 0
    %315 = vmatpush1.bf16.msra.mxu0 %v246
    %316 = vmatprep.subr.bf16.mxu0 0
    %317 = vmatpush1.bf16.msra.mxu0 %v247
    %318 = vmatprep.subr.bf16.mxu0 0
    %319 = vmatpush1.bf16.msra.mxu0 %v248
    %320 = vmatprep.subr.bf16.mxu0 0
    %321 = vmatpush1.bf16.msra.mxu0 0
    %322 = vmatprep.subr.bf16.mxu0 0
    %323 = vmatpush1.bf16.msra.mxu0 0
    %324 = vmatprep.subr.bf16.mxu0 0
    %325 = vmatpush1.bf16.msra.mxu0 0
    %326 = vmatprep.subr.bf16.mxu0 0
    %327 = vmatpush1.bf16.msra.mxu0 0
    %328 = vmatprep.subr.bf16.mxu0 0
    %329 = vmatpush1.bf16.msra.mxu0 0
    %330 = vmatprep.subr.bf16.mxu0 0
    %331 = vmatpush1.bf16.msra.mxu0 0
    %332 = vmatprep.subr.bf16.mxu0 0
    %333 = vmatpush1.bf16.msra.mxu0 0
    %334 = vmatprep.subr.bf16.mxu0 0
    %335 = vmatpush1.bf16.msra.mxu0 0
    %336 = vmatprep.mubr.bf16.mxu0 0
    %337 = vmatmul.mubr.bf16.gmra.mrb[0].mxu0 %v288
    %v338 = vpop.f32.mrb[0].mxu0
    %v339 = vadd.f32 %v254, %v338
    %v340 = vpop.f32.mrb[0].mxu0
    %v341 = vpop.f32.mrb[0].mxu0
    %v342 = vadd.f32 %v254, %v341
    %v343 = vpop.f32.mrb[0].mxu0
    %344 = vmatprep.mubr.bf16.mxu0 0
    %345 = vmatmul.mubr.bf16.gmra.mrb[0].mxu0 %v289
    %v346 = vpop.f32.mrb[0].mxu0
    %v347 = vadd.f32 %v254, %v346
    %v348 = vpop.f32.mrb[0].mxu0
    %v349 = vpop.f32.mrb[0].mxu0
    %v350 = vadd.f32 %v254, %v349
    %v351 = vpop.f32.mrb[0].mxu0
    %352 = vmatprep.mubr.bf16.mxu0 0
    %353 = vmatmul.mubr.bf16.gmra.mrb[0].mxu0 %v290
    %v354 = vpop.f32.mrb[0].mxu0
    %v355 = vadd.f32 %v254, %v354
    %v356 = vpop.f32.mrb[0].mxu0
    %v357 = vpop.f32.mrb[0].mxu0
    %v358 = vadd.f32 %v254, %v357
    %v359 = vpop.f32.mrb[0].mxu0
    %360 = vmatprep.mubr.bf16.mxu0 0
    %361 = vmatmul.mubr.bf16.gmra.mrb[0].mxu0 %v291
    %v362 = vpop.f32.mrb[0].mxu0
    %v363 = vadd.f32 %v254, %v362
    %v364 = vpop.f32.mrb[0].mxu0
    %v365 = vpop.f32.mrb[0].mxu0
    %v366 = vadd.f32 %v254, %v365
    %v367 = vpop.f32.mrb[0].mxu0
    %368 = vmatprep.mubr.bf16.mxu0 0
    %369 = vmatmul.mubr.bf16.gmra.mrb[0].mxu0 %v292
    %v370 = vpop.f32.mrb[0].mxu0
    %v371 = vadd.f32 %v254, %v370
    %v372 = vpop.f32.mrb[0].mxu0
    %v373 = vpop.f32.mrb[0].mxu0
    %v374 = vadd.f32 %v254, %v373
    %v375 = vpop.f32.mrb[0].mxu0
    %376 = vmatprep.mubr.bf16.mxu0 0
    %377 = vmatmul.mubr.bf16.gmra.mrb[0].mxu0 %v293
    %v378 = vpop.f32.mrb[0].mxu0
    %v379 = vadd.f32 %v254, %v378
    %v380 = vpop.f32.mrb[0].mxu0
    %v381 = vpop.f32.mrb[0].mxu0
    %v382 = vadd.f32 %v254, %v381
    %v383 = vpop.f32.mrb[0].mxu0
    %384 = vmatprep.mubr.bf16.mxu0 0
    %385 = vmatmul.mubr.bf16.gmra.mrb[0].mxu0 %v294
    %v386 = vpop.f32.mrb[0].mxu0
    %v387 = vadd.f32 %v254, %v386
    %v388 = vpop.f32.mrb[0].mxu0
    %v389 = vpop.f32.mrb[0].mxu0
    %v390 = vadd.f32 %v254, %v389
    %v391 = vpop.f32.mrb[0].mxu0
    %392 = vmatprep.mubr.bf16.mxu0 0
    %393 = vmatmul.mubr.bf16.gmra.mrb[0].mxu0 %v295
    %v394 = vpop.f32.mrb[0].mxu0
    %v395 = vadd.f32 %v254, %v394
    %v396 = vpop.f32.mrb[0].mxu0
    %v397 = vpop.f32.mrb[0].mxu0
    %v398 = vadd.f32 %v254, %v397
    %v399 = vpop.f32.mrb[0].mxu0
    %400 = vdwg.mxu0
    %v401 = vmax.f32 %v339, 0.0
    %v402 = vmax.f32 %v342, 0.0
    %v403 = vmax.f32 %v347, 0.0
    %v404 = vmax.f32 %v350, 0.0
    %v405 = vmax.f32 %v355, 0.0
    %v406 = vmax.f32 %v358, 0.0
    %v407 = vmax.f32 %v363, 0.0
    %v408 = vmax.f32 %v366, 0.0
    %v409 = vmax.f32 %v371, 0.0
    %v410 = vmax.f32 %v374, 0.0
    %v411 = vmax.f32 %v379, 0.0
    %v412 = vmax.f32 %v382, 0.0
    %v413 = vmax.f32 %v387, 0.0
    %v414 = vmax.f32 %v390, 0.0
    %v415 = vmax.f32 %v395, 0.0
    %v416 = vmax.f32 %v398, 0.0
    %v417 = vpack.c.bf16 %v402, %v401
    %v418 = vpack.c.bf16 %v404, %v403
    %v419 = vpack.c.bf16 %v406, %v405
    %v420 = vpack.c.bf16 %v408, %v407
    %v421 = vpack.c.bf16 %v410, %v409
    %v422 = vpack.c.bf16 %v412, %v411
    %v423 = vpack.c.bf16 %v414, %v413
    %v424 = vpack.c.bf16 %v416, %v415
    %v425 = vld [vmem:[%s4] sm:$0xf]
    %v426 = vld [vmem:[%s4 + $0x4] sm:$0xf]
    %v427 = vld [vmem:[%s4 + $0x8] sm:$0xf]
    %v428 = vld [vmem:[%s4 + $0xc] sm:$0xf]
    %v433 = vunpack.c.l.b16 %v425
    %v434 = vunpack.c.l.b16 %v426
    %v435 = vunpack.c.l.b16 %v427
    %v436 = vunpack.c.l.b16 %v428
    %v437 = vpack.c.b16 %v434, %v433
    %v438 = vpack.c.b16 %v436, %v435
    %vm441 = vcmask 261120
    %v443 = vsel %vm441, %v417, 0
    %v446 = vsel %vm441, %v418, 0
    %v449 = vsel %vm441, %v419, 0
    %v452 = vsel %vm441, %v420, 0
    %v455 = vsel %vm441, %v421, 0
    %v458 = vsel %vm441, %v422, 0
    %v461 = vsel %vm441, %v423, 0
    %v464 = vsel %vm441, %v424, 0
    %466 = vmatprep.subr.bf16.mxu0 0
    %467 = vmatpush1.bf16.msra.mxu0 %v437
    %468 = vmatprep.subr.bf16.mxu0 0
    %469 = vmatpush1.bf16.msra.mxu0 %v438
    %470 = vmatprep.subr.bf16.mxu0 0
    %471 = vmatpush1.bf16.msra.mxu0 0
    %472 = vmatprep.subr.bf16.mxu0 0
    %473 = vmatpush1.bf16.msra.mxu0 0
    %474 = vmatprep.subr.bf16.mxu0 0
    %475 = vmatpush1.bf16.msra.mxu0 0
    %476 = vmatprep.subr.bf16.mxu0 0
    %477 = vmatpush1.bf16.msra.mxu0 0
    %478 = vmatprep.subr.bf16.mxu0 0
    %479 = vmatpush1.bf16.msra.mxu0 0
    %480 = vmatprep.subr.bf16.mxu0 0
    %481 = vmatpush1.bf16.msra.mxu0 0
    %482 = vmatprep.subr.bf16.mxu0 0
    %483 = vmatpush1.bf16.msra.mxu0 0
    %484 = vmatprep.subr.bf16.mxu0 0
    %485 = vmatpush1.bf16.msra.mxu0 0
    %486 = vmatprep.subr.bf16.mxu0 0
    %487 = vmatpush1.bf16.msra.mxu0 0
    %488 = vmatprep.subr.bf16.mxu0 0
    %489 = vmatpush1.bf16.msra.mxu0 0
    %490 = vmatprep.subr.bf16.mxu0 0
    %491 = vmatpush1.bf16.msra.mxu0 0
    %492 = vmatprep.subr.bf16.mxu0 0
    %493 = vmatpush1.bf16.msra.mxu0 0
    %494 = vmatprep.subr.bf16.mxu0 0
    %495 = vmatpush1.bf16.msra.mxu0 0
    %496 = vmatprep.subr.bf16.mxu0 0
    %497 = vmatpush1.bf16.msra.mxu0 0
    %498 = vmatprep.mubr.bf16.mxu0 0
    %499 = vmatmul.mubr.bf16.gmra.mrb[0].mxu0 %v443
    %v500 = vpop.f32.mrb[0].mxu0
    %v501 = vadd.f32 0.0, %v500
    %v502 = vpop.f32.mrb[0].mxu0
    %v503 = vpop.f32.mrb[0].mxu0
    %v504 = vadd.f32 0.0, %v503
    %v505 = vpop.f32.mrb[0].mxu0
    %506 = vmatprep.mubr.bf16.mxu0 0
    %507 = vmatmul.mubr.bf16.gmra.mrb[0].mxu0 %v446
    %v508 = vpop.f32.mrb[0].mxu0
    %v509 = vadd.f32 0.0, %v508
    %v510 = vpop.f32.mrb[0].mxu0
    %v511 = vpop.f32.mrb[0].mxu0
    %v512 = vadd.f32 0.0, %v511
    %v513 = vpop.f32.mrb[0].mxu0
    %514 = vmatprep.mubr.bf16.mxu0 0
    %515 = vmatmul.mubr.bf16.gmra.mrb[0].mxu0 %v449
    %v516 = vpop.f32.mrb[0].mxu0
    %v517 = vadd.f32 0.0, %v516
    %v518 = vpop.f32.mrb[0].mxu0
    %v519 = vpop.f32.mrb[0].mxu0
    %v520 = vadd.f32 0.0, %v519
    %v521 = vpop.f32.mrb[0].mxu0
    %522 = vmatprep.mubr.bf16.mxu0 0
    %523 = vmatmul.mubr.bf16.gmra.mrb[0].mxu0 %v452
    %v524 = vpop.f32.mrb[0].mxu0
    %v525 = vadd.f32 0.0, %v524
    %v526 = vpop.f32.mrb[0].mxu0
    %v527 = vpop.f32.mrb[0].mxu0
    %v528 = vadd.f32 0.0, %v527
    %v529 = vpop.f32.mrb[0].mxu0
    %530 = vmatprep.mubr.bf16.mxu0 0
    %531 = vmatmul.mubr.bf16.gmra.mrb[0].mxu0 %v455
    %v532 = vpop.f32.mrb[0].mxu0
    %v533 = vadd.f32 0.0, %v532
    %v534 = vpop.f32.mrb[0].mxu0
    %v535 = vpop.f32.mrb[0].mxu0
    %v536 = vadd.f32 0.0, %v535
    %v537 = vpop.f32.mrb[0].mxu0
    %538 = vmatprep.mubr.bf16.mxu0 0
    %539 = vmatmul.mubr.bf16.gmra.mrb[0].mxu0 %v458
    %v540 = vpop.f32.mrb[0].mxu0
    %v541 = vadd.f32 0.0, %v540
    %v542 = vpop.f32.mrb[0].mxu0
    %v543 = vpop.f32.mrb[0].mxu0
    %v544 = vadd.f32 0.0, %v543
    %v545 = vpop.f32.mrb[0].mxu0
    %546 = vmatprep.mubr.bf16.mxu0 0
    %547 = vmatmul.mubr.bf16.gmra.mrb[0].mxu0 %v461
    %v548 = vpop.f32.mrb[0].mxu0
    %v549 = vadd.f32 0.0, %v548
    %v550 = vpop.f32.mrb[0].mxu0
    %v551 = vpop.f32.mrb[0].mxu0
    %v552 = vadd.f32 0.0, %v551
    %v553 = vpop.f32.mrb[0].mxu0
    %554 = vmatprep.mubr.bf16.mxu0 0
    %555 = vmatmul.mubr.bf16.gmra.mrb[0].mxu0 %v464
    %v556 = vpop.f32.mrb[0].mxu0
    %v557 = vadd.f32 0.0, %v556
    %v558 = vpop.f32.mrb[0].mxu0
    %v559 = vpop.f32.mrb[0].mxu0
    %v560 = vadd.f32 0.0, %v559
    %v561 = vpop.f32.mrb[0].mxu0
    %562 = vdwg.mxu0
    %v563 = vpack.c.bf16 %v504, %v501
    %v564 = vpack.c.bf16 %v512, %v509
    %v565 = vpack.c.bf16 %v520, %v517
    %v566 = vpack.c.bf16 %v528, %v525
    %v567 = vpack.c.bf16 %v536, %v533
    %v568 = vpack.c.bf16 %v544, %v541
    %v569 = vpack.c.bf16 %v552, %v549
    %v570 = vpack.c.bf16 %v560, %v557
    %v571 = vld [vmem:[%s5] sm:$0x1]
    %v573 = vlaneseq
    %v574 = vshrl.u32 %v573, 7
    %v575 = vsub.s32 0, %v574
    %v576 = vrot.slane %v571, %v575
    %578 = vmatprep.subr.bf16.mxu0 0
    %579 = vmatpush1.bf16.msra.mxu0 %v563
    %580 = vmatprep.subr.bf16.mxu0 0
    %581 = vmatpush1.bf16.msra.mxu0 %v564
    %582 = vmatprep.subr.bf16.mxu0 0
    %583 = vmatpush1.bf16.msra.mxu0 %v565
    %584 = vmatprep.subr.bf16.mxu0 0
    %585 = vmatpush1.bf16.msra.mxu0 %v566
    %586 = vmatprep.subr.bf16.mxu0 0
    %587 = vmatpush1.bf16.msra.mxu0 %v567
    %588 = vmatprep.subr.bf16.mxu0 0
    %589 = vmatpush1.bf16.msra.mxu0 %v568
    %590 = vmatprep.subr.bf16.mxu0 0
    %591 = vmatpush1.bf16.msra.mxu0 %v569
    %592 = vmatprep.subr.bf16.mxu0 0
    %593 = vmatpush1.bf16.msra.mxu0 %v570
    %594 = vmatprep.subr.bf16.mxu0 0
    %595 = vmatpush1.bf16.msra.mxu0 0
    %596 = vmatprep.subr.bf16.mxu0 0
    %597 = vmatpush1.bf16.msra.mxu0 0
    %598 = vmatprep.subr.bf16.mxu0 0
    %599 = vmatpush1.bf16.msra.mxu0 0
    %600 = vmatprep.subr.bf16.mxu0 0
    %601 = vmatpush1.bf16.msra.mxu0 0
    %602 = vmatprep.subr.bf16.mxu0 0
    %603 = vmatpush1.bf16.msra.mxu0 0
    %604 = vmatprep.subr.bf16.mxu0 0
    %605 = vmatpush1.bf16.msra.mxu0 0
    %606 = vmatprep.subr.bf16.mxu0 0
    %607 = vmatpush1.bf16.msra.mxu0 0
    %608 = vmatprep.subr.bf16.mxu0 0
    %609 = vmatpush1.bf16.msra.mxu0 0
    %610 = vmatprep.mubr.bf16.mxu0 0
    %611 = vmatmul.mubr.bf16.gmra.mrb[0].mxu0 %v288
    %v612 = vpop.f32.mrb[0].mxu0
    %v613 = vadd.f32 %v576, %v612
    %v614 = vpop.f32.mrb[0].mxu0
    %v615 = vpop.f32.mrb[0].mxu0
    %v616 = vadd.f32 %v576, %v615
    %v617 = vpop.f32.mrb[0].mxu0
    %618 = vmatprep.mubr.bf16.mxu0 0
    %619 = vmatmul.mubr.bf16.gmra.mrb[0].mxu0 %v289
    %v620 = vpop.f32.mrb[0].mxu0
    %v621 = vadd.f32 %v576, %v620
    %v622 = vpop.f32.mrb[0].mxu0
    %v623 = vpop.f32.mrb[0].mxu0
    %v624 = vadd.f32 %v576, %v623
    %v625 = vpop.f32.mrb[0].mxu0
    %626 = vmatprep.mubr.bf16.mxu0 0
    %627 = vmatmul.mubr.bf16.gmra.mrb[0].mxu0 %v290
    %v628 = vpop.f32.mrb[0].mxu0
    %v629 = vadd.f32 %v576, %v628
    %v630 = vpop.f32.mrb[0].mxu0
    %v631 = vpop.f32.mrb[0].mxu0
    %v632 = vadd.f32 %v576, %v631
    %v633 = vpop.f32.mrb[0].mxu0
    %634 = vmatprep.mubr.bf16.mxu0 0
    %635 = vmatmul.mubr.bf16.gmra.mrb[0].mxu0 %v291
    %v636 = vpop.f32.mrb[0].mxu0
    %v637 = vadd.f32 %v576, %v636
    %v638 = vpop.f32.mrb[0].mxu0
    %v639 = vpop.f32.mrb[0].mxu0
    %v640 = vadd.f32 %v576, %v639
    %v641 = vpop.f32.mrb[0].mxu0
    %642 = vmatprep.mubr.bf16.mxu0 0
    %643 = vmatmul.mubr.bf16.gmra.mrb[0].mxu0 %v292
    %v644 = vpop.f32.mrb[0].mxu0
    %v645 = vadd.f32 %v576, %v644
    %v646 = vpop.f32.mrb[0].mxu0
    %v647 = vpop.f32.mrb[0].mxu0
    %v648 = vadd.f32 %v576, %v647
    %v649 = vpop.f32.mrb[0].mxu0
    %650 = vmatprep.mubr.bf16.mxu0 0
    %651 = vmatmul.mubr.bf16.gmra.mrb[0].mxu0 %v293
    %v652 = vpop.f32.mrb[0].mxu0
    %v653 = vadd.f32 %v576, %v652
    %v654 = vpop.f32.mrb[0].mxu0
    %v655 = vpop.f32.mrb[0].mxu0
    %v656 = vadd.f32 %v576, %v655
    %v657 = vpop.f32.mrb[0].mxu0
    %658 = vmatprep.mubr.bf16.mxu0 0
    %659 = vmatmul.mubr.bf16.gmra.mrb[0].mxu0 %v294
    %v660 = vpop.f32.mrb[0].mxu0
    %v661 = vadd.f32 %v576, %v660
    %v662 = vpop.f32.mrb[0].mxu0
    %v663 = vpop.f32.mrb[0].mxu0
    %v664 = vadd.f32 %v576, %v663
    %v665 = vpop.f32.mrb[0].mxu0
    %666 = vmatprep.mubr.bf16.mxu0 0
    %667 = vmatmul.mubr.bf16.gmra.mrb[0].mxu0 %v295
    %v668 = vpop.f32.mrb[0].mxu0
    %v669 = vadd.f32 %v576, %v668
    %v670 = vpop.f32.mrb[0].mxu0
    %v671 = vpop.f32.mrb[0].mxu0
    %v672 = vadd.f32 %v576, %v671
    %v673 = vpop.f32.mrb[0].mxu0
    %674 = vdwg.mxu0
    %675 = vst [vmem:[#allocation5] sm:$0xff] %v613
    %676 = vst [vmem:[#allocation5 + $0x8] sm:$0xff] %v616
    %677 = vst [vmem:[#allocation5 + $0x10] sm:$0xff] %v621
    %678 = vst [vmem:[#allocation5 + $0x18] sm:$0xff] %v624
    %679 = vst [vmem:[#allocation5 + $0x20] sm:$0xff] %v629
    %680 = vst [vmem:[#allocation5 + $0x28] sm:$0xff] %v632
    %681 = vst [vmem:[#allocation5 + $0x30] sm:$0xff] %v637
    %682 = vst [vmem:[#allocation5 + $0x38] sm:$0xff] %v640
    %683 = vst [vmem:[#allocation5 + $0x40] sm:$0xff] %v645
    %684 = vst [vmem:[#allocation5 + $0x48] sm:$0xff] %v648
    %685 = vst [vmem:[#allocation5 + $0x50] sm:$0xff] %v653
    %686 = vst [vmem:[#allocation5 + $0x58] sm:$0xff] %v656
    %687 = vst [vmem:[#allocation5 + $0x60] sm:$0xff] %v661
    %688 = vst [vmem:[#allocation5 + $0x68] sm:$0xff] %v664
    %689 = vst [vmem:[#allocation5 + $0x70] sm:$0xff] %v669
    %690 = vst [vmem:[#allocation5 + $0x78] sm:$0xff] %v672
    // Predicated region
    $region30: #{social_gnn_forward_fused.1} parent=1 // pred_check
      _
    $region31: #{social_gnn_forward_fused.1} parent=1 // pred_check_branch
      %692 = sbr.rel (0) target = $region33
    $region32: #{social_gnn_forward_fused.1} parent=1 // pred_region
      %s694 = ssub.s32 2048, 2048
      %695 = vsyncadd [#allocation4], %s694
      %s696 = sshll.u32 [#allocation5], 4
      %s697 = int_to_ptr.vmem [resolvable:$true] %s696
      %702 = dma.vmem_to_hbm [thread:$0]  %s697, 2048, %s6, [#allocation4], 128, 128, 8
    $region33: #{social_gnn_forward_fused.1} parent=1 // pred_fallthru
      _
    // Predicated region
    $region34: #{social_gnn_forward_fused.1} parent=1 // pred_check
      _
    $region35: #{social_gnn_forward_fused.1} parent=1 // pred_check_branch
      %704 = sbr.rel (0) target = $region37
    $region36: #{social_gnn_forward_fused.1} parent=1 // pred_region
      %705 = dma.done [#allocation4], 2048
    $region37: #{social_gnn_forward_fused.1} parent=1 // pred_fallthru
      _
    %706 = vsyncpa [#allocation3], 1
    %707 = vsyncpa [#allocation4], 1

</llo_original>
